<compile_context>
chip_gen: v7x
topology: tpu7x:2x2x1
jax: 0.10.0
libtpu: 0.0.40
codegen_flags: <defaults>
</compile_context>

<pallas_src>
import functools

import jax
import jax.numpy as jnp
from jax import lax
from jax.experimental import pallas as pl
from jax.experimental.pallas import tpu as pltpu


def _round_up(a: int, m: int) -> int:
    return (a + m - 1) // m * m


def _make_mmd_kernel(tile: int, dim: int, n_x: int, n_y: int, mxu_dtype):
    inv_d = 1.0 / float(dim)
    dn = (((1,), (1,)), ((), ()))  # contract last dim of lhs with last dim of rhs

    def kernel(xi_ref, xj_ref, yi_ref, yj_ref, oxx_ref, oyy_ref, oxy_ref):
        i = pl.program_id(0)
        j = pl.program_id(1)

        @pl.when(j == 0)
        def _init():
            oxx_ref[...] = jnp.zeros_like(oxx_ref)
            oyy_ref[...] = jnp.zeros_like(oyy_ref)
            oxy_ref[...] = jnp.zeros_like(oxy_ref)

        # Prescale by 1/D once per tile (O(T*D)) so the per-element exponent is
        # exactly 2*a'.b' - |a'|^2 - |b'|^2 (no O(T^2) scale / negate later).
        xi = xi_ref[...].astype(jnp.float32) * inv_d         # (T, D)
        yj = yj_ref[...].astype(jnp.float32) * inv_d          # (T, D)
        xi_m = xi.astype(mxu_dtype)
        yj_m = yj.astype(mxu_dtype)

        # Row-validity masks (padding rows contribute 0), lane-oriented (1, T).
        lane = lax.broadcasted_iota(jnp.int32, (1, tile), 1)
        vxi = (lane + i * tile < n_x).astype(jnp.float32)
        vxj = (lane + j * tile < n_x).astype(jnp.float32)
        vyi = (lane + i * tile < n_y).astype(jnp.float32)
        vyj = (lane + j * tile < n_y).astype(jnp.float32)

        ones_row = jnp.ones((1, dim), jnp.float32)

        # Squared norms: sublane-column layout for the "row" operand, and a
        # lane-dense row layout for the "column" operand produced with an MXU
        # contraction (avoids an explicit (T,1)->(1,T) transpose).
        xi_sq_col = jnp.sum(xi * xi, axis=1, keepdims=True)                       # (T, 1)
        yj_sq_row = lax.dot_general(ones_row, yj * yj, dn,
                                    preferred_element_type=jnp.float32)           # (1, T)

        def masked_colsum(ab, a_sq_col, b_sq_row, v_rows, v_cols):
            # exponent = -||a'_r - b'_c||^2 ; clamp against cancellation so k <= 1.
            e = jnp.minimum(2.0 * ab - a_sq_col - b_sq_row, 0.0)
            k = jnp.exp(e)                                                        # EUP
            # Fold the row mask into an MXU column-sum -> lane-dense (1, T).
            cs = jnp.dot(v_rows, k, preferred_element_type=jnp.float32)
            return cs * v_cols

        # Cross term k(x, y): needed for every (i, j) block.
        ab_xy = lax.dot_general(xi_m, yj_m, dn, preferred_element_type=jnp.float32)
        oxy_ref[...] += masked_colsum(ab_xy, xi_sq_col, yj_sq_row, vxi, vyj)

        # Symmetric terms k(x, x) and k(y, y): upper-triangular blocks only,
        # off-diagonal blocks weighted 2x (block sums are symmetric in (i, j)).
        @pl.when(j >= i)
        def _sym():
            xj = xj_ref[...].astype(jnp.float32) * inv_d
            yi = yi_ref[...].astype(jnp.float32) * inv_d
            xj_m = xj.astype(mxu_dtype)
            yi_m = yi.astype(mxu_dtype)

            xj_sq_row = lax.dot_general(ones_row, xj * xj, dn,
                                        preferred_element_type=jnp.float32)
            yi_sq_col = jnp.sum(yi * yi, axis=1, keepdims=True)

            ab_xx = lax.dot_general(xi_m, xj_m, dn, preferred_element_type=jnp.float32)
            ab_yy = lax.dot_general(yi_m, yj_m, dn, preferred_element_type=jnp.float32)

            w = jnp.where(j == i, 1.0, 2.0).astype(jnp.float32)
            oxx_ref[...] += w * masked_colsum(ab_xx, xi_sq_col, xj_sq_row, vxi, vxj)
            oyy_ref[...] += w * masked_colsum(ab_yy, yi_sq_col, yj_sq_row, vyi, vyj)

    return kernel


def sim_loss(x, y, *, tile=None):
    """x: (Nx, D), y: (Ny, D) -> scalar f32 MMD (matches SimLoss.forward)."""
    n_x, dim = x.shape
    n_y, dim_y = y.shape
    assert dim == dim_y, "x and y must share the feature dimension"
    n_max = max(n_x, n_y)
    itemsize = jnp.dtype(x.dtype).itemsize

    # --- tile selection: multiples of 8, capped at 256 (MXU-friendly) and
    # shrunk so double-buffered operand tiles + (T, T) temporaries stay well
    # within v7x's 64 MiB VMEM. ---
    if tile is None:
        n8 = _round_up(n_max, 8)
        tile = n8 if n8 <= 256 else 256
        while tile > 8 and (8 * tile * dim * itemsize + 8 * tile * tile * 4) > (24 << 20):
            tile = _round_up(tile // 2, 8)
    assert tile >= 8 and tile % 8 == 0, "tile must be a positive multiple of 8"

    n_pad = _round_up(n_max, tile)
    n_blocks = n_pad // tile

    xp = jnp.pad(x, ((0, n_pad - n_x), (0, 0)))
    yp = jnp.pad(y, ((0, n_pad - n_y), (0, 0)))

    kernel = _make_mmd_kernel(tile, dim, n_x, n_y, x.dtype)

    row_i_spec = pl.BlockSpec((tile, dim), lambda i, j: (i, 0))
    row_j_spec = pl.BlockSpec((tile, dim), lambda i, j: (j, 0))
    out_spec = pl.BlockSpec((1, tile), lambda i, j: (i, 0))
    out_sds = jax.ShapeDtypeStruct((n_blocks, tile), jnp.float32)

    oxx, oyy, oxy = pl.pallas_call(
        kernel,
        out_shape=(out_sds, out_sds, out_sds),
        grid=(n_blocks, n_blocks),
        in_specs=[row_i_spec, row_j_spec, row_i_spec, row_j_spec],
        out_specs=(out_spec, out_spec, out_spec),
        compiler_params=pltpu.CompilerParams(
            dimension_semantics=("parallel", "arbitrary"),
            vmem_limit_bytes=48 * 1024 * 1024,
        ),
    )(xp, xp, yp, yp)

    # Tiny final reduction + normalization in plain JAX (outside the kernel).
    mmd = (jnp.sum(oxx) / float(n_x * n_x)
           + jnp.sum(oyy) / float(n_y * n_y)
           - 2.0 * jnp.sum(oxy) / float(n_x * n_y))
    return mmd


def _reference(x, y):
    # Pure-JAX reference mirroring the PyTorch broadcasting formulation.
    def compute_kernel(a, b):
        d = a[:, None, :] - b[None, :, :]
        k_in = jnp.mean(d * d, axis=2) / a.shape[1]
        return jnp.exp(-k_in)
    return (compute_kernel(x, x).mean()
            + compute_kernel(y, y).mean()
            - 2.0 * compute_kernel(x, y).mean())


if __name__ == "__main__":
    key = jax.random.PRNGKey(0)
    kx, ky = jax.random.split(key)
    Nx, Ny, D = 48, 40, 32
    x = jax.random.normal(kx, (Nx, D), dtype=jnp.float32)
    y = jax.random.normal(ky, (Ny, D), dtype=jnp.float32)

    ref = jax.block_until_ready(_reference(x, y))

    # Auto tile (single block at this size).
    mmd_auto = jax.block_until_ready(sim_loss(x, y))
    # Forced small tile: exercises the 3x3 grid, padding masks, symmetric-block
    # skipping and the per-i-block accumulation path.
    mmd_tiled = jax.block_until_ready(sim_loss(x, y, tile=16))

    assert jnp.allclose(mmd_auto, ref, rtol=1e-5, atol=2e-5), (mmd_auto, ref)
    assert jnp.allclose(mmd_tiled, ref, rtol=1e-5, atol=2e-5), (mmd_tiled, ref)
    print("KERNEL_OK")
</pallas_src>

<mosaic_0001>
module attributes {stable_mosaic.version = 11 : i64} {
  func.func @kernel(%arg0: i32, %arg1: i32, %arg2: memref<48x32xf32, #tpu.memory_space<vmem>>, %arg3: memref<48x32xf32, #tpu.memory_space<vmem>>, %arg4: memref<48x32xf32, #tpu.memory_space<vmem>>, %arg5: memref<48x32xf32, #tpu.memory_space<vmem>>, %arg6: memref<1x48xf32, #tpu.memory_space<vmem>>, %arg7: memref<1x48xf32, #tpu.memory_space<vmem>>, %arg8: memref<1x48xf32, #tpu.memory_space<vmem>>) attributes {dimension_semantics = [#tpu.dimension_semantics<parallel>, #tpu.dimension_semantics<arbitrary>], iteration_bounds = array<i64: 1, 1>, scalar_prefetch = 0 : i64, scratch_operands = 0 : i64, tpu.core_type = #tpu.core_type<tc>, window_params = [{transform_indices = @transform_0, window_bounds = array<i64: 48, 32>}, {transform_indices = @transform_1, window_bounds = array<i64: 48, 32>}, {transform_indices = @transform_2, window_bounds = array<i64: 48, 32>}, {transform_indices = @transform_3, window_bounds = array<i64: 48, 32>}, {transform_indices = @transform_4, window_bounds = array<i64: 1, 48>}, {transform_indices = @transform_5, window_bounds = array<i64: 1, 48>}, {transform_indices = @transform_6, window_bounds = array<i64: 1, 48>}]} {
    %c0_i32 = arith.constant 0 : i32
    %0 = arith.cmpi eq, %arg1, %c0_i32 : i32
    %1 = arith.extui %0 : i1 to i32
    %c0_i32_0 = arith.constant 0 : i32
    %2 = arith.cmpi ne, %1, %c0_i32_0 : i32
    scf.if %2 {
      %cst_23 = arith.constant 0.000000e+00 : f32
      %62 = vector.broadcast %cst_23 : f32 to vector<1x48xf32>
      %c0_24 = arith.constant 0 : index
      %c0_25 = arith.constant 0 : index
      %63 = vector.load %arg6[%c0_24, %c0_25] : memref<1x48xf32, #tpu.memory_space<vmem>>, vector<1x48xf32>
      tpu.vector_store %arg6[%c0_24, %c0_25], %62 {strides = array<i32>} : memref<1x48xf32, #tpu.memory_space<vmem>>, vector<1x48xf32>,
      %cst_26 = arith.constant 0.000000e+00 : f32
      %64 = vector.broadcast %cst_26 : f32 to vector<1x48xf32>
      %c0_27 = arith.constant 0 : index
      %c0_28 = arith.constant 0 : index
      %65 = vector.load %arg7[%c0_27, %c0_28] : memref<1x48xf32, #tpu.memory_space<vmem>>, vector<1x48xf32>
      tpu.vector_store %arg7[%c0_27, %c0_28], %64 {strides = array<i32>} : memref<1x48xf32, #tpu.memory_space<vmem>>, vector<1x48xf32>,
      %cst_29 = arith.constant 0.000000e+00 : f32
      %66 = vector.broadcast %cst_29 : f32 to vector<1x48xf32>
      %c0_30 = arith.constant 0 : index
      %c0_31 = arith.constant 0 : index
      %67 = vector.load %arg8[%c0_30, %c0_31] : memref<1x48xf32, #tpu.memory_space<vmem>>, vector<1x48xf32>
      tpu.vector_store %arg8[%c0_30, %c0_31], %66 {strides = array<i32>} : memref<1x48xf32, #tpu.memory_space<vmem>>, vector<1x48xf32>,
    } else {
    }
    %c0 = arith.constant 0 : index
    %c0_1 = arith.constant 0 : index
    %3 = vector.load %arg2[%c0, %c0_1] : memref<48x32xf32, #tpu.memory_space<vmem>>, vector<48x32xf32>
    %cst = arith.constant 3.125000e-02 : f32
    %4 = vector.broadcast %cst : f32 to vector<48x32xf32>
    %5 = arith.mulf %3, %4 : vector<48x32xf32>
    %c0_2 = arith.constant 0 : index
    %c0_3 = arith.constant 0 : index
    %6 = vector.load %arg5[%c0_2, %c0_3] : memref<48x32xf32, #tpu.memory_space<vmem>>, vector<48x32xf32>
    %cst_4 = arith.constant 3.125000e-02 : f32
    %7 = vector.broadcast %cst_4 : f32 to vector<48x32xf32>
    %8 = arith.mulf %6, %7 : vector<48x32xf32>
    %9 = tpu.iota {dimensions = array<i32: 1>} : vector<1x48xi32>
    %c48_i32 = arith.constant 48 : i32
    %10 = arith.muli %arg0, %c48_i32 : i32
    %11 = vector.broadcast %10 : i32 to vector<1x48xi32>
    %12 = arith.addi %9, %11 : vector<1x48xi32>
    %c48_i32_5 = arith.constant 48 : i32
    %13 = vector.broadcast %c48_i32_5 : i32 to vector<1x48xi32>
    %14 = arith.cmpi slt, %12, %13 : vector<1x48xi32>
    %15 = arith.extui %14 : vector<1x48xi1> to vector<1x48xi32>
    %16 = arith.sitofp %15 : vector<1x48xi32> to vector<1x48xf32>
    %c48_i32_6 = arith.constant 48 : i32
    %17 = arith.muli %arg1, %c48_i32_6 : i32
    %18 = vector.broadcast %17 : i32 to vector<1x48xi32>
    %19 = arith.addi %9, %18 : vector<1x48xi32>
    %c48_i32_7 = arith.constant 48 : i32
    %20 = vector.broadcast %c48_i32_7 : i32 to vector<1x48xi32>
    %21 = arith.cmpi slt, %19, %20 : vector<1x48xi32>
    %22 = arith.extui %21 : vector<1x48xi1> to vector<1x48xi32>
    %23 = arith.sitofp %22 : vector<1x48xi32> to vector<1x48xf32>
    %c48_i32_8 = arith.constant 48 : i32
    %24 = arith.muli %arg0, %c48_i32_8 : i32
    %25 = vector.broadcast %24 : i32 to vector<1x48xi32>
    %26 = arith.addi %9, %25 : vector<1x48xi32>
    %c40_i32 = arith.constant 40 : i32
    %27 = vector.broadcast %c40_i32 : i32 to vector<1x48xi32>
    %28 = arith.cmpi slt, %26, %27 : vector<1x48xi32>
    %29 = arith.extui %28 : vector<1x48xi1> to vector<1x48xi32>
    %30 = arith.sitofp %29 : vector<1x48xi32> to vector<1x48xf32>
    %c48_i32_9 = arith.constant 48 : i32
    %31 = arith.muli %arg1, %c48_i32_9 : i32
    %32 = vector.broadcast %31 : i32 to vector<1x48xi32>
    %33 = arith.addi %9, %32 : vector<1x48xi32>
    %c40_i32_10 = arith.constant 40 : i32
    %34 = vector.broadcast %c40_i32_10 : i32 to vector<1x48xi32>
    %35 = arith.cmpi slt, %33, %34 : vector<1x48xi32>
    %36 = arith.extui %35 : vector<1x48xi1> to vector<1x48xi32>
    %37 = arith.sitofp %36 : vector<1x48xi32> to vector<1x48xf32>
    %cst_11 = arith.constant 1.000000e+00 : f32
    %38 = vector.broadcast %cst_11 : f32 to vector<1x32xf32>
    %39 = arith.mulf %5, %5 : vector<48x32xf32>
    %cst_12 = arith.constant dense<0.000000e+00> : vector<48xf32>
    %40 = vector.multi_reduction <add>, %39, %cst_12 [1] : vector<48x32xf32> to vector<48xf32>
    %41 = vector.shape_cast %40 : vector<48xf32> to vector<48x1xf32>
    %42 = arith.mulf %8, %8 : vector<48x32xf32>
    %cst_13 = arith.constant dense<0.000000e+00> : vector<1x48xf32>
    %43 = tpu.matmul %38, %42, %cst_13 {dimension_numbers = #tpu.dot_dimension_numbers<[1], [1], [0], [0], [0, 0, 1, 0], [], []>} : vector<1x32xf32>, vector<48x32xf32>, vector<1x48xf32> -> vector<1x48xf32>
    %cst_14 = arith.constant dense<0.000000e+00> : vector<48x48xf32>
    %44 = tpu.matmul %5, %8, %cst_14 {dimension_numbers = #tpu.dot_dimension_numbers<[1], [1], [0], [0], [0, 0, 1, 0], [], []>} : vector<48x32xf32>, vector<48x32xf32>, vector<48x48xf32> -> vector<48x48xf32>
    %c0_15 = arith.constant 0 : index
    %c0_16 = arith.constant 0 : index
    %45 = vector.load %arg8[%c0_15, %c0_16] : memref<1x48xf32, #tpu.memory_space<vmem>>, vector<1x48xf32>
    %cst_17 = arith.constant 2.000000e+00 : f32
    %46 = vector.broadcast %cst_17 : f32 to vector<48x48xf32>
    %47 = arith.mulf %46, %44 : vector<48x48xf32>
    %48 = vector.broadcast %41 : vector<48x1xf32> to vector<48x48xf32>
    %49 = arith.subf %47, %48 : vector<48x48xf32>
    %50 = vector.broadcast %43 : vector<1x48xf32> to vector<48x48xf32>
    %51 = arith.subf %49, %50 : vector<48x48xf32>
    %cst_18 = arith.constant 0.000000e+00 : f32
    %52 = vector.broadcast %cst_18 : f32 to vector<48x48xf32>
    %53 = arith.minimumf %51, %52 : vector<48x48xf32>
    %54 = math.exp %53 : vector<48x48xf32>
    %cst_19 = arith.constant dense<0.000000e+00> : vector<1x48xf32>
    %55 = tpu.matmul %16, %54, %cst_19 {dimension_numbers = #tpu.dot_dimension_numbers<[1], [0], [0], [1], [0, 0, 1, 1], [], []>} : vector<1x48xf32>, vector<48x48xf32>, vector<1x48xf32> -> vector<1x48xf32>
    %56 = arith.mulf %55, %37 : vector<1x48xf32>
    %57 = arith.addf %45, %56 : vector<1x48xf32>
    %c0_20 = arith.constant 0 : index
    %c0_21 = arith.constant 0 : index
    %58 = vector.load %arg8[%c0_20, %c0_21] : memref<1x48xf32, #tpu.memory_space<vmem>>, vector<1x48xf32>
    tpu.vector_store %arg8[%c0_20, %c0_21], %57 {strides = array<i32>} : memref<1x48xf32, #tpu.memory_space<vmem>>, vector<1x48xf32>,
    %59 = arith.cmpi sge, %arg1, %arg0 : i32
    %60 = arith.extui %59 : i1 to i32
    %c0_i32_22 = arith.constant 0 : i32
    %61 = arith.cmpi ne, %60, %c0_i32_22 : i32
    scf.if %61 {
      %c0_23 = arith.constant 0 : index
      %c0_24 = arith.constant 0 : index
      %62 = vector.load %arg3[%c0_23, %c0_24] : memref<48x32xf32, #tpu.memory_space<vmem>>, vector<48x32xf32>
      %cst_25 = arith.constant 3.125000e-02 : f32
      %63 = vector.broadcast %cst_25 : f32 to vector<48x32xf32>
      %64 = arith.mulf %62, %63 : vector<48x32xf32>
      %c0_26 = arith.constant 0 : index
      %c0_27 = arith.constant 0 : index
      %65 = vector.load %arg4[%c0_26, %c0_27] : memref<48x32xf32, #tpu.memory_space<vmem>>, vector<48x32xf32>
      %cst_28 = arith.constant 3.125000e-02 : f32
      %66 = vector.broadcast %cst_28 : f32 to vector<48x32xf32>
      %67 = arith.mulf %65, %66 : vector<48x32xf32>
      %68 = arith.mulf %64, %64 : vector<48x32xf32>
      %cst_29 = arith.constant dense<0.000000e+00> : vector<1x48xf32>
      %69 = tpu.matmul %38, %68, %cst_29 {dimension_numbers = #tpu.dot_dimension_numbers<[1], [1], [0], [0], [0, 0, 1, 0], [], []>} : vector<1x32xf32>, vector<48x32xf32>, vector<1x48xf32> -> vector<1x48xf32>
      %70 = arith.mulf %67, %67 : vector<48x32xf32>
      %cst_30 = arith.constant dense<0.000000e+00> : vector<48xf32>
      %71 = vector.multi_reduction <add>, %70, %cst_30 [1] : vector<48x32xf32> to vector<48xf32>
      %72 = vector.shape_cast %71 : vector<48xf32> to vector<48x1xf32>
      %cst_31 = arith.constant dense<0.000000e+00> : vector<48x48xf32>
      %73 = tpu.matmul %5, %64, %cst_31 {dimension_numbers = #tpu.dot_dimension_numbers<[1], [1], [0], [0], [0, 0, 1, 0], [], []>} : vector<48x32xf32>, vector<48x32xf32>, vector<48x48xf32> -> vector<48x48xf32>
      %cst_32 = arith.constant dense<0.000000e+00> : vector<48x48xf32>
      %74 = tpu.matmul %67, %8, %cst_32 {dimension_numbers = #tpu.dot_dimension_numbers<[1], [1], [0], [0], [0, 0, 1, 0], [], []>} : vector<48x32xf32>, vector<48x32xf32>, vector<48x48xf32> -> vector<48x48xf32>
      %75 = arith.cmpi eq, %arg1, %arg0 : i32
      %cst_33 = arith.constant 1.000000e+00 : f32
      %cst_34 = arith.constant 2.000000e+00 : f32
      %76 = arith.select %75, %cst_33, %cst_34 : f32
      %c0_35 = arith.constant 0 : index
      %c0_36 = arith.constant 0 : index
      %77 = vector.load %arg6[%c0_35, %c0_36] : memref<1x48xf32, #tpu.memory_space<vmem>>, vector<1x48xf32>
      %cst_37 = arith.constant 2.000000e+00 : f32
      %78 = vector.broadcast %cst_37 : f32 to vector<48x48xf32>
      %79 = arith.mulf %78, %73 : vector<48x48xf32>
      %80 = vector.broadcast %41 : vector<48x1xf32> to vector<48x48xf32>
      %81 = arith.subf %79, %80 : vector<48x48xf32>
      %82 = vector.broadcast %69 : vector<1x48xf32> to vector<48x48xf32>
      %83 = arith.subf %81, %82 : vector<48x48xf32>
      %cst_38 = arith.constant 0.000000e+00 : f32
      %84 = vector.broadcast %cst_38 : f32 to vector<48x48xf32>
      %85 = arith.minimumf %83, %84 : vector<48x48xf32>
      %86 = math.exp %85 : vector<48x48xf32>
      %cst_39 = arith.constant dense<0.000000e+00> : vector<1x48xf32>
      %87 = tpu.matmul %16, %86, %cst_39 {dimension_numbers = #tpu.dot_dimension_numbers<[1], [0], [0], [1], [0, 0, 1, 1], [], []>} : vector<1x48xf32>, vector<48x48xf32>, vector<1x48xf32> -> vector<1x48xf32>
      %88 = arith.mulf %87, %23 : vector<1x48xf32>
      %89 = vector.broadcast %76 : f32 to vector<1x48xf32>
      %90 = arith.mulf %89, %88 : vector<1x48xf32>
      %91 = arith.addf %77, %90 : vector<1x48xf32>
      %c0_40 = arith.constant 0 : index
      %c0_41 = arith.constant 0 : index
      %92 = vector.load %arg6[%c0_40, %c0_41] : memref<1x48xf32, #tpu.memory_space<vmem>>, vector<1x48xf32>
      tpu.vector_store %arg6[%c0_40, %c0_41], %91 {strides = array<i32>} : memref<1x48xf32, #tpu.memory_space<vmem>>, vector<1x48xf32>,
      %c0_42 = arith.constant 0 : index
      %c0_43 = arith.constant 0 : index
      %93 = vector.load %arg7[%c0_42, %c0_43] : memref<1x48xf32, #tpu.memory_space<vmem>>, vector<1x48xf32>
      %cst_44 = arith.constant 2.000000e+00 : f32
      %94 = vector.broadcast %cst_44 : f32 to vector<48x48xf32>
      %95 = arith.mulf %94, %74 : vector<48x48xf32>
      %96 = vector.broadcast %72 : vector<48x1xf32> to vector<48x48xf32>
      %97 = arith.subf %95, %96 : vector<48x48xf32>
      %98 = vector.broadcast %43 : vector<1x48xf32> to vector<48x48xf32>
      %99 = arith.subf %97, %98 : vector<48x48xf32>
      %cst_45 = arith.constant 0.000000e+00 : f32
      %100 = vector.broadcast %cst_45 : f32 to vector<48x48xf32>
      %101 = arith.minimumf %99, %100 : vector<48x48xf32>
      %102 = math.exp %101 : vector<48x48xf32>
      %cst_46 = arith.constant dense<0.000000e+00> : vector<1x48xf32>
      %103 = tpu.matmul %30, %102, %cst_46 {dimension_numbers = #tpu.dot_dimension_numbers<[1], [0], [0], [1], [0, 0, 1, 1], [], []>} : vector<1x48xf32>, vector<48x48xf32>, vector<1x48xf32> -> vector<1x48xf32>
      %104 = arith.mulf %103, %37 : vector<1x48xf32>
      %105 = vector.broadcast %76 : f32 to vector<1x48xf32>
      %106 = arith.mulf %105, %104 : vector<1x48xf32>
      %107 = arith.addf %93, %106 : vector<1x48xf32>
      %c0_47 = arith.constant 0 : index
      %c0_48 = arith.constant 0 : index
      %108 = vector.load %arg7[%c0_47, %c0_48] : memref<1x48xf32, #tpu.memory_space<vmem>>, vector<1x48xf32>
      tpu.vector_store %arg7[%c0_47, %c0_48], %107 {strides = array<i32>} : memref<1x48xf32, #tpu.memory_space<vmem>>, vector<1x48xf32>,
    } else {
    }
    return
  }
  func.func @transform_0(%arg0: i32, %arg1: i32) -> (i32, i32) {
    %c0_i32 = arith.constant 0 : i32
    %c0_i32_0 = arith.constant 0 : i32
    return %arg0, %c0_i32 : i32, i32
  }
  func.func @transform_1(%arg0: i32, %arg1: i32) -> (i32, i32) {
    %c0_i32 = arith.constant 0 : i32
    %c0_i32_0 = arith.constant 0 : i32
    return %arg1, %c0_i32 : i32, i32
  }
  func.func @transform_2(%arg0: i32, %arg1: i32) -> (i32, i32) {
    %c0_i32 = arith.constant 0 : i32
    %c0_i32_0 = arith.constant 0 : i32
    return %arg0, %c0_i32 : i32, i32
  }
  func.func @transform_3(%arg0: i32, %arg1: i32) -> (i32, i32) {
    %c0_i32 = arith.constant 0 : i32
    %c0_i32_0 = arith.constant 0 : i32
    return %arg1, %c0_i32 : i32, i32
  }
  func.func @transform_4(%arg0: i32, %arg1: i32) -> (i32, i32) {
    %c0_i32 = arith.constant 0 : i32
    %c0_i32_0 = arith.constant 0 : i32
    return %arg0, %c0_i32 : i32, i32
  }
  func.func @transform_5(%arg0: i32, %arg1: i32) -> (i32, i32) {
    %c0_i32 = arith.constant 0 : i32
    %c0_i32_0 = arith.constant 0 : i32
    return %arg0, %c0_i32 : i32, i32
  }
  func.func @transform_6(%arg0: i32, %arg1: i32) -> (i32, i32) {
    %c0_i32 = arith.constant 0 : i32
    %c0_i32_0 = arith.constant 0 : i32
    return %arg0, %c0_i32 : i32, i32
  }
}

</mosaic_0001>

<llo_original>
// kernel: tpu_custom_call.1
$region0: #{tpu_custom_call.1}
  #allocation0 [shape = 'u32[]', space=smem, size = 0x4, offset = 0x4, fixed_abs, tag = 'smem constant byte address 0x4 - core index']
  #allocation1 [shape = 'u32[144,128]{1,0:T(1,128)}', space=vmem, size = 0x12000, scoped, tag = 'internal scratch']
  %s0 = inlined_call_operand.vmem [shape: f32[48,32], index: 0, kind: input, shape index: {}]
  %s1 = inlined_call_operand.vmem [shape: f32[48,32], index: 1, kind: input, shape index: {}]
  %s2 = inlined_call_operand.vmem [shape: f32[48,32], index: 2, kind: input, shape index: {}]
  %s3 = inlined_call_operand.vmem [shape: f32[48,32], index: 3, kind: input, shape index: {}]
  %s4 = inlined_call_operand.hbm [shape: f32[1,48], index: 4, kind: output, shape index: {0}]
  %s5 = inlined_call_operand.hbm [shape: f32[1,48], index: 5, kind: output, shape index: {1}]
  %s6 = inlined_call_operand.hbm [shape: f32[1,48], index: 6, kind: output, shape index: {2}]
  %7 = xla_tuple %s4, %s5, %s6
  %s8 = sld [smem:[#allocation0]]
  $region50: #{tpu_custom_call.1} parent=0
    _
  %s10 = ssub.s32 1, %s8
  %s11 = scalar_select 0, %s10, %s8
  $region1: #{tpu_custom_call.1} parent=0
    #allocation2 [shape = 'u8[512]{0}', space=vmem, size = 0x400, scoped, tag = 'output window, operand 0, single buffered']
    #allocation3 [shape = 's32[1]{0}', space=sflag, size = 0x4, scoped, tag = 'scoped memory for tpu_custom_call.1']
    #allocation4 [shape = 'u8[512]{0}', space=vmem, size = 0x400, scoped, tag = 'output window, operand 1, single buffered']
    #allocation5 [shape = 's32[1]{0}', space=sflag, size = 0x4, scoped, tag = 'scoped memory for tpu_custom_call.1']
    #allocation6 [shape = 'u8[512]{0}', space=vmem, size = 0x400, scoped, tag = 'output window, operand 2, single buffered']
    %12 = vsyncpa [#allocation3], 0
    %13 = vsyncpa [#allocation5], 0
    // Predicated region
    $region2: #{tpu_custom_call.1} parent=1 // pred_check
      _
    $region3: #{tpu_custom_call.1} parent=1 // pred_check_branch
      %15 = sbr.rel (0) target = $region5
    $region4: #{tpu_custom_call.1} parent=1 // pred_region
      _
    $region5: #{tpu_custom_call.1} parent=1 // pred_fallthru
      _
    // Predicated region
    $region6: #{tpu_custom_call.1} parent=1 // pred_check
      _
    $region7: #{tpu_custom_call.1} parent=1 // pred_check_branch
      %17 = sbr.rel (0) target = $region9
    $region8: #{tpu_custom_call.1} parent=1 // pred_region
      _
    $region9: #{tpu_custom_call.1} parent=1 // pred_fallthru
      _
    // Predicated region
    $region10: #{tpu_custom_call.1} parent=1 // pred_check
      _
    $region11: #{tpu_custom_call.1} parent=1 // pred_check_branch
      %19 = sbr.rel (0) target = $region13
    $region12: #{tpu_custom_call.1} parent=1 // pred_region
      _
    $region13: #{tpu_custom_call.1} parent=1 // pred_fallthru
      _
    // Predicated region
    $region14: #{tpu_custom_call.1} parent=1 // pred_check
      _
    $region15: #{tpu_custom_call.1} parent=1 // pred_check_branch
      %21 = sbr.rel (0) target = $region17
    $region16: #{tpu_custom_call.1} parent=1 // pred_region
      _
    $region17: #{tpu_custom_call.1} parent=1 // pred_fallthru
      _
    %p22 = scmp.eq.s32.totalorder 0, 0
    // Predicated region
    $region18: #{tpu_custom_call.1} parent=1 // pred_check
      %p23 = pneg %p22
    $region19: #{tpu_custom_call.1} parent=1 // pred_check_branch
      %25 = sbr.rel (%p23) target = $region21
    $region20: #{tpu_custom_call.1} parent=1 // pred_region
      %vm26 = vcmask 385024
      %27 = vst.msk [vmem:[#allocation2] sm:$0x1] %vm26, 0.0
      %28 = vst.msk [vmem:[#allocation4] sm:$0x1] %vm26, 0.0
      %29 = vst.msk [vmem:[#allocation6] sm:$0x1] %vm26, 0.0
    $region21: #{tpu_custom_call.1} parent=1 // pred_fallthru
      _
    %v30 = vld [vmem:[%s0] sm:$0xff]
    %v31 = vld [vmem:[%s0 + $0x8] sm:$0xff]
    %v32 = vld [vmem:[%s0 + $0x10] sm:$0xff]
    %v33 = vld [vmem:[%s0 + $0x18] sm:$0xff]
    %v34 = vld [vmem:[%s0 + $0x20] sm:$0xff]
    %v35 = vld [vmem:[%s0 + $0x28] sm:$0xff]
    %v36 = vmul.f32 %v30, 0.03125
    %v37 = vmul.f32 %v31, 0.03125
    %v38 = vmul.f32 %v32, 0.03125
    %v39 = vmul.f32 %v33, 0.03125
    %v40 = vmul.f32 %v34, 0.03125
    %v41 = vmul.f32 %v35, 0.03125
    %v42 = vld [vmem:[%s3] sm:$0xff]
    %v43 = vld [vmem:[%s3 + $0x8] sm:$0xff]
    %v44 = vld [vmem:[%s3 + $0x10] sm:$0xff]
    %v45 = vld [vmem:[%s3 + $0x18] sm:$0xff]
    %v46 = vld [vmem:[%s3 + $0x20] sm:$0xff]
    %v47 = vld [vmem:[%s3 + $0x28] sm:$0xff]
    %v48 = vmul.f32 %v42, 0.03125
    %v49 = vmul.f32 %v43, 0.03125
    %v50 = vmul.f32 %v44, 0.03125
    %v51 = vmul.f32 %v45, 0.03125
    %v52 = vmul.f32 %v46, 0.03125
    %v53 = vmul.f32 %v47, 0.03125
    %v54 = vlaneseq
    %v55 = vand.u32 %v54, 127
    %s56 = smul.u32 0, 48
    %v57 = vstv %s56
    %v58 = vadd.s32 %v55, %v57
    %vm59 = vcmp.lt.s32.totalorder %v58, 48
    %v60 = vsel %vm59, 1, 0
    %v61 = vcvt.s32.f32 %v60
    %s62 = smul.u32 0, 48
    %v63 = vstv %s62
    %v64 = vadd.s32 %v55, %v63
    %vm65 = vcmp.lt.s32.totalorder %v64, 48
    %v66 = vsel %vm65, 1, 0
    %v67 = vcvt.s32.f32 %v66
    %vm68 = vcmp.lt.s32.totalorder %v58, 40
    %v69 = vsel %vm68, 1, 0
    %v70 = vcvt.s32.f32 %v69
    %vm71 = vcmp.lt.s32.totalorder %v64, 40
    %v72 = vsel %vm71, 1, 0
    %v73 = vcvt.s32.f32 %v72
    %v74 = vmul.f32 %v36, %v36
    %v75 = vmul.f32 %v37, %v37
    %v76 = vmul.f32 %v38, %v38
    %v77 = vmul.f32 %v39, %v39
    %v78 = vmul.f32 %v40, %v40
    %v79 = vmul.f32 %v41, %v41
    %vm80 = vcmask 261120
    %v81 = vsel %vm80, %v74, 0.0
    %82 = vadd.xlane.f32.xlu0 %v81
    %v83 = vpop.xlane.xlu0 %82
    %v84 = vsel %vm80, %v75, 0.0
    %85 = vadd.xlane.f32.xlu0 %v84
    %v86 = vpop.xlane.xlu0 %85
    %v87 = vsel %vm80, %v76, 0.0
    %88 = vadd.xlane.f32.xlu0 %v87
    %v89 = vpop.xlane.xlu0 %88
    %v90 = vsel %vm80, %v77, 0.0
    %91 = vadd.xlane.f32.xlu0 %v90
    %v92 = vpop.xlane.xlu0 %91
    %v93 = vsel %vm80, %v78, 0.0
    %94 = vadd.xlane.f32.xlu0 %v93
    %v95 = vpop.xlane.xlu0 %94
    %v96 = vsel %vm80, %v79, 0.0
    %97 = vadd.xlane.f32.xlu0 %v96
    %v98 = vpop.xlane.xlu0 %97
    %v99 = vmul.f32 %v48, %v48
    %v100 = vmul.f32 %v49, %v49
    %v101 = vmul.f32 %v50, %v50
    %v102 = vmul.f32 %v51, %v51
    %v103 = vmul.f32 %v52, %v52
    %v104 = vmul.f32 %v53, %v53
    %v106 = vsel %vm80, 1.0, 0
    %v109 = vsel %vm80, %v99, 0
    %v112 = vsel %vm80, %v100, 0
    %v115 = vsel %vm80, %v101, 0
    %v118 = vsel %vm80, %v102, 0
    %v121 = vsel %vm80, %v103, 0
    %v124 = vsel %vm80, %v104, 0
    %126 = vmatprep.subr.mxu0 0.0
    %127 = vmatpush1.xpose.msra.mxu0 %v109
    %128 = vmatprep.subr.mxu0 0.0
    %129 = vmatpush1.xpose.msra.mxu0 %v112
    %130 = vmatprep.subr.mxu0 0.0
    %131 = vmatpush1.xpose.msra.mxu0 %v115
    %132 = vmatprep.subr.mxu0 0.0
    %133 = vmatpush1.xpose.msra.mxu0 %v118
    %134 = vmatprep.subr.mxu0 0.0
    %135 = vmatpush1.xpose.msra.mxu0 %v121
    %136 = vmatprep.subr.mxu0 0.0
    %137 = vmatpush1.xpose.msra.mxu0 %v124
    %138 = vmatprep.subr.mxu0 0.0
    %139 = vmatpush1.xpose.msra.mxu0 0.0
    %140 = vmatprep.subr.mxu0 0.0
    %141 = vmatpush1.xpose.msra.mxu0 0.0
    %142 = vmatprep.subr.mxu0 0.0
    %143 = vmatpush1.xpose.msra.mxu0 0.0
    %144 = vmatprep.subr.mxu0 0.0
    %145 = vmatpush1.xpose.msra.mxu0 0.0
    %146 = vmatprep.subr.mxu0 0.0
    %147 = vmatpush1.xpose.msra.mxu0 0.0
    %148 = vmatprep.subr.mxu0 0.0
    %149 = vmatpush1.xpose.msra.mxu0 0.0
    %150 = vmatprep.subr.mxu0 0.0
    %151 = vmatpush1.xpose.msra.mxu0 0.0
    %152 = vmatprep.subr.mxu0 0.0
    %153 = vmatpush1.xpose.msra.mxu0 0.0
    %154 = vmatprep.subr.mxu0 0.0
    %155 = vmatpush1.xpose.msra.mxu0 0.0
    %156 = vmatprep.subr.mxu0 0.0
    %157 = vmatpush1.xpose.msra.mxu0 0.0
    %158 = vmatprep.subr.mxu0 0.0
    %159 = vmatpush1.xpose.msra.mxu0 0.0
    %160 = vmatprep.subr.mxu0 0.0
    %161 = vmatpush1.xpose.msra.mxu0 0.0
    %162 = vmatprep.subr.mxu0 0.0
    %163 = vmatpush1.xpose.msra.mxu0 0.0
    %164 = vmatprep.subr.mxu0 0.0
    %165 = vmatpush1.xpose.msra.mxu0 0.0
    %166 = vmatprep.subr.mxu0 0.0
    %167 = vmatpush1.xpose.msra.mxu0 0.0
    %168 = vmatprep.subr.mxu0 0.0
    %169 = vmatpush1.xpose.msra.mxu0 0.0
    %170 = vmatprep.subr.mxu0 0.0
    %171 = vmatpush1.xpose.msra.mxu0 0.0
    %172 = vmatprep.subr.mxu0 0.0
    %173 = vmatpush1.xpose.msra.mxu0 0.0
    %174 = vmatprep.subr.mxu0 0.0
    %175 = vmatpush1.xpose.msra.mxu0 0.0
    %176 = vmatprep.subr.mxu0 0.0
    %177 = vmatpush1.xpose.msra.mxu0 0.0
    %178 = vmatprep.subr.mxu0 0.0
    %179 = vmatpush1.xpose.msra.mxu0 0.0
    %180 = vmatprep.subr.mxu0 0.0
    %181 = vmatpush1.xpose.msra.mxu0 0.0
    %182 = vmatprep.subr.mxu0 0.0
    %183 = vmatpush1.xpose.msra.mxu0 0.0
    %184 = vmatprep.subr.mxu0 0.0
    %185 = vmatpush1.xpose.msra.mxu0 0.0
    %186 = vmatprep.subr.mxu0 0.0
    %187 = vmatpush1.xpose.msra.mxu0 0.0
    %188 = vmatprep.subr.mxu0 0.0
    %189 = vmatpush1.xpose.msra.mxu0 0.0
    %190 = vmatprep.mubr.f32.mxu0 0.0
    %191 = vmatmul.mubr.f32.gmra.mrb[0].mxu0 %v106
    %v192 = vpop.f32.mrb[0].mxu0
    %v193 = vadd.f32 0.0, %v192
    %v194 = vpop.f32.mrb[0].mxu0
    %195 = vdwg.mxu0
    %v197 = vsel %vm80, %v36, 0
    %v200 = vsel %vm80, %v37, 0
    %v203 = vsel %vm80, %v38, 0
    %v206 = vsel %vm80, %v39, 0
    %v209 = vsel %vm80, %v40, 0
    %v212 = vsel %vm80, %v41, 0
    %v215 = vsel %vm80, %v48, 0
    %v218 = vsel %vm80, %v49, 0
    %v221 = vsel %vm80, %v50, 0
    %v224 = vsel %vm80, %v51, 0
    %v227 = vsel %vm80, %v52, 0
    %v230 = vsel %vm80, %v53, 0
    %232 = vmatprep.subr.mxu0 0.0
    %233 = vmatpush1.xpose.msra.mxu0 %v215
    %234 = vmatprep.subr.mxu0 0.0
    %235 = vmatpush1.xpose.msra.mxu0 %v218
    %236 = vmatprep.subr.mxu0 0.0
    %237 = vmatpush1.xpose.msra.mxu0 %v221
    %238 = vmatprep.subr.mxu0 0.0
    %239 = vmatpush1.xpose.msra.mxu0 %v224
    %240 = vmatprep.subr.mxu0 0.0
    %241 = vmatpush1.xpose.msra.mxu0 %v227
    %242 = vmatprep.subr.mxu0 0.0
    %243 = vmatpush1.xpose.msra.mxu0 %v230
    %244 = vmatprep.subr.mxu0 0.0
    %245 = vmatpush1.xpose.msra.mxu0 0.0
    %246 = vmatprep.subr.mxu0 0.0
    %247 = vmatpush1.xpose.msra.mxu0 0.0
    %248 = vmatprep.subr.mxu0 0.0
    %249 = vmatpush1.xpose.msra.mxu0 0.0
    %250 = vmatprep.subr.mxu0 0.0
    %251 = vmatpush1.xpose.msra.mxu0 0.0
    %252 = vmatprep.subr.mxu0 0.0
    %253 = vmatpush1.xpose.msra.mxu0 0.0
    %254 = vmatprep.subr.mxu0 0.0
    %255 = vmatpush1.xpose.msra.mxu0 0.0
    %256 = vmatprep.subr.mxu0 0.0
    %257 = vmatpush1.xpose.msra.mxu0 0.0
    %258 = vmatprep.subr.mxu0 0.0
    %259 = vmatpush1.xpose.msra.mxu0 0.0
    %260 = vmatprep.subr.mxu0 0.0
    %261 = vmatpush1.xpose.msra.mxu0 0.0
    %262 = vmatprep.subr.mxu0 0.0
    %263 = vmatpush1.xpose.msra.mxu0 0.0
    %264 = vmatprep.subr.mxu0 0.0
    %265 = vmatpush1.xpose.msra.mxu0 0.0
    %266 = vmatprep.subr.mxu0 0.0
    %267 = vmatpush1.xpose.msra.mxu0 0.0
    %268 = vmatprep.subr.mxu0 0.0
    %269 = vmatpush1.xpose.msra.mxu0 0.0
    %270 = vmatprep.subr.mxu0 0.0
    %271 = vmatpush1.xpose.msra.mxu0 0.0
    %272 = vmatprep.subr.mxu0 0.0
    %273 = vmatpush1.xpose.msra.mxu0 0.0
    %274 = vmatprep.subr.mxu0 0.0
    %275 = vmatpush1.xpose.msra.mxu0 0.0
    %276 = vmatprep.subr.mxu0 0.0
    %277 = vmatpush1.xpose.msra.mxu0 0.0
    %278 = vmatprep.subr.mxu0 0.0
    %279 = vmatpush1.xpose.msra.mxu0 0.0
    %280 = vmatprep.subr.mxu0 0.0
    %281 = vmatpush1.xpose.msra.mxu0 0.0
    %282 = vmatprep.subr.mxu0 0.0
    %283 = vmatpush1.xpose.msra.mxu0 0.0
    %284 = vmatprep.subr.mxu0 0.0
    %285 = vmatpush1.xpose.msra.mxu0 0.0
    %286 = vmatprep.subr.mxu0 0.0
    %287 = vmatpush1.xpose.msra.mxu0 0.0
    %288 = vmatprep.subr.mxu0 0.0
    %289 = vmatpush1.xpose.msra.mxu0 0.0
    %290 = vmatprep.subr.mxu0 0.0
    %291 = vmatpush1.xpose.msra.mxu0 0.0
    %292 = vmatprep.subr.mxu0 0.0
    %293 = vmatpush1.xpose.msra.mxu0 0.0
    %294 = vmatprep.subr.mxu0 0.0
    %295 = vmatpush1.xpose.msra.mxu0 0.0
    %296 = vmatprep.mubr.f32.mxu0 0.0
    %297 = vmatmul.mubr.f32.gmra.mrb[0].mxu0 %v197
    %v298 = vpop.f32.mrb[0].mxu0
    %v299 = vadd.f32 0.0, %v298
    %v300 = vpop.f32.mrb[0].mxu0
    %301 = vmatprep.mubr.f32.mxu0 0.0
    %302 = vmatmul.mubr.f32.gmra.mrb[0].mxu0 %v200
    %v303 = vpop.f32.mrb[0].mxu0
    %v304 = vadd.f32 0.0, %v303
    %v305 = vpop.f32.mrb[0].mxu0
    %306 = vmatprep.mubr.f32.mxu0 0.0
    %307 = vmatmul.mubr.f32.gmra.mrb[0].mxu0 %v203
    %v308 = vpop.f32.mrb[0].mxu0
    %v309 = vadd.f32 0.0, %v308
    %v310 = vpop.f32.mrb[0].mxu0
    %311 = vmatprep.mubr.f32.mxu0 0.0
    %312 = vmatmul.mubr.f32.gmra.mrb[0].mxu0 %v206
    %v313 = vpop.f32.mrb[0].mxu0
    %v314 = vadd.f32 0.0, %v313
    %v315 = vpop.f32.mrb[0].mxu0
    %316 = vmatprep.mubr.f32.mxu0 0.0
    %317 = vmatmul.mubr.f32.gmra.mrb[0].mxu0 %v209
    %v318 = vpop.f32.mrb[0].mxu0
    %v319 = vadd.f32 0.0, %v318
    %v320 = vpop.f32.mrb[0].mxu0
    %321 = vmatprep.mubr.f32.mxu0 0.0
    %322 = vmatmul.mubr.f32.gmra.mrb[0].mxu0 %v212
    %v323 = vpop.f32.mrb[0].mxu0
    %v324 = vadd.f32 0.0, %v323
    %v325 = vpop.f32.mrb[0].mxu0
    %326 = vdwg.mxu0
    %v327 = vld [vmem:[#allocation6] sm:$0x1]
    %v328 = vmul.f32 %v299, 2.0
    %v329 = vmul.f32 %v304, 2.0
    %v330 = vmul.f32 %v309, 2.0
    %v331 = vmul.f32 %v314, 2.0
    %v332 = vmul.f32 %v319, 2.0
    %v333 = vmul.f32 %v324, 2.0
    %v334 = vsub.f32 %v328, %v83
    %v335 = vsub.f32 %v329, %v86
    %v336 = vsub.f32 %v330, %v89
    %v337 = vsub.f32 %v331, %v92
    %v338 = vsub.f32 %v332, %v95
    %v339 = vsub.f32 %v333, %v98
    %v340 = vlaneseq
    %v341 = vshrl.u32 %v340, 7
    %v342 = vsub.s32 0, %v341
    %v343 = vrot.slane %v193, %v342
    %v344 = vsub.f32 %v334, %v343
    %v345 = vsub.f32 %v335, %v343
    %v346 = vsub.f32 %v336, %v343
    %v347 = vsub.f32 %v337, %v343
    %v348 = vsub.f32 %v338, %v343
    %v349 = vsub.f32 %v339, %v343
    %v350 = vmin.f32 %v344, 0.0
    %v351 = vmin.f32 %v345, 0.0
    %v352 = vmin.f32 %v346, 0.0
    %v353 = vmin.f32 %v347, 0.0
    %v354 = vmin.f32 %v348, 0.0
    %v355 = vmin.f32 %v349, 0.0
    %v356 = vmul.f32 %v350, 1.442695
    %v357 = vpow.pop %v356
    %v358 = vmul.f32 %v351, 1.442695
    %v359 = vpow.pop %v358
    %v360 = vmul.f32 %v352, 1.442695
    %v361 = vpow.pop %v360
    %v362 = vmul.f32 %v353, 1.442695
    %v363 = vpow.pop %v362
    %v364 = vmul.f32 %v354, 1.442695
    %v365 = vpow.pop %v364
    %v366 = vmul.f32 %v355, 1.442695
    %v367 = vpow.pop %v366
    %vm368 = vcmask 392192
    %v370 = vsel %vm368, %v61, 0
    %372 = vmatprep.subr.mxu0 0.0
    %373 = vmatpush1.msra.mxu0 %v357
    %374 = vmatprep.subr.mxu0 0.0
    %375 = vmatpush1.msra.mxu0 %v359
    %376 = vmatprep.subr.mxu0 0.0
    %377 = vmatpush1.msra.mxu0 %v361
    %378 = vmatprep.subr.mxu0 0.0
    %379 = vmatpush1.msra.mxu0 %v363
    %380 = vmatprep.subr.mxu0 0.0
    %381 = vmatpush1.msra.mxu0 %v365
    %382 = vmatprep.subr.mxu0 0.0
    %383 = vmatpush1.msra.mxu0 %v367
    %384 = vmatprep.subr.mxu0 0.0
    %385 = vmatpush1.msra.mxu0 0.0
    %386 = vmatprep.subr.mxu0 0.0
    %387 = vmatpush1.msra.mxu0 0.0
    %388 = vmatprep.subr.mxu0 0.0
    %389 = vmatpush1.msra.mxu0 0.0
    %390 = vmatprep.subr.mxu0 0.0
    %391 = vmatpush1.msra.mxu0 0.0
    %392 = vmatprep.subr.mxu0 0.0
    %393 = vmatpush1.msra.mxu0 0.0
    %394 = vmatprep.subr.mxu0 0.0
    %395 = vmatpush1.msra.mxu0 0.0
    %396 = vmatprep.subr.mxu0 0.0
    %397 = vmatpush1.msra.mxu0 0.0
    %398 = vmatprep.subr.mxu0 0.0
    %399 = vmatpush1.msra.mxu0 0.0
    %400 = vmatprep.subr.mxu0 0.0
    %401 = vmatpush1.msra.mxu0 0.0
    %402 = vmatprep.subr.mxu0 0.0
    %403 = vmatpush1.msra.mxu0 0.0
    %404 = vmatprep.subr.mxu0 0.0
    %405 = vmatpush1.msra.mxu0 0.0
    %406 = vmatprep.subr.mxu0 0.0
    %407 = vmatpush1.msra.mxu0 0.0
    %408 = vmatprep.subr.mxu0 0.0
    %409 = vmatpush1.msra.mxu0 0.0
    %410 = vmatprep.subr.mxu0 0.0
    %411 = vmatpush1.msra.mxu0 0.0
    %412 = vmatprep.subr.mxu0 0.0
    %413 = vmatpush1.msra.mxu0 0.0
    %414 = vmatprep.subr.mxu0 0.0
    %415 = vmatpush1.msra.mxu0 0.0
    %416 = vmatprep.subr.mxu0 0.0
    %417 = vmatpush1.msra.mxu0 0.0
    %418 = vmatprep.subr.mxu0 0.0
    %419 = vmatpush1.msra.mxu0 0.0
    %420 = vmatprep.subr.mxu0 0.0
    %421 = vmatpush1.msra.mxu0 0.0
    %422 = vmatprep.subr.mxu0 0.0
    %423 = vmatpush1.msra.mxu0 0.0
    %424 = vmatprep.subr.mxu0 0.0
    %425 = vmatpush1.msra.mxu0 0.0
    %426 = vmatprep.subr.mxu0 0.0
    %427 = vmatpush1.msra.mxu0 0.0
    %428 = vmatprep.subr.mxu0 0.0
    %429 = vmatpush1.msra.mxu0 0.0
    %430 = vmatprep.subr.mxu0 0.0
    %431 = vmatpush1.msra.mxu0 0.0
    %432 = vmatprep.subr.mxu0 0.0
    %433 = vmatpush1.msra.mxu0 0.0
    %434 = vmatprep.subr.mxu0 0.0
    %435 = vmatpush1.msra.mxu0 0.0
    %436 = vmatprep.mubr.f32.mxu0 0.0
    %437 = vmatmul.mubr.f32.gmra.mrb[0].mxu0 %v370
    %v438 = vpop.f32.mrb[0].mxu0
    %v439 = vadd.f32 0.0, %v438
    %v440 = vpop.f32.mrb[0].mxu0
    %441 = vdwg.mxu0
    %v442 = vmul.f32 %v439, %v73
    %v443 = vadd.f32 %v327, %v442
    %vm444 = vcmask 385024
    %445 = vst.msk [vmem:[#allocation6] sm:$0x1] %vm444, %v443
    %p446 = scmp.ge.s32.totalorder 0, 0
    // Predicated region
    $region22: #{tpu_custom_call.1} parent=1 // pred_check
      %p447 = pneg %p446
    $region23: #{tpu_custom_call.1} parent=1 // pred_check_branch
      %449 = sbr.rel (%p447) target = $region25
    $region24: #{tpu_custom_call.1} parent=1 // pred_region
      %v450 = vld [vmem:[%s1] sm:$0xff]
      %v451 = vld [vmem:[%s1 + $0x8] sm:$0xff]
      %v452 = vld [vmem:[%s1 + $0x10] sm:$0xff]
      %v453 = vld [vmem:[%s1 + $0x18] sm:$0xff]
      %v454 = vld [vmem:[%s1 + $0x20] sm:$0xff]
      %v455 = vld [vmem:[%s1 + $0x28] sm:$0xff]
      %v456 = vmul.f32 %v450, 0.03125
      %v457 = vmul.f32 %v451, 0.03125
      %v458 = vmul.f32 %v452, 0.03125
      %v459 = vmul.f32 %v453, 0.03125
      %v460 = vmul.f32 %v454, 0.03125
      %v461 = vmul.f32 %v455, 0.03125
      %v462 = vld [vmem:[%s2] sm:$0xff]
      %v463 = vld [vmem:[%s2 + $0x8] sm:$0xff]
      %v464 = vld [vmem:[%s2 + $0x10] sm:$0xff]
      %v465 = vld [vmem:[%s2 + $0x18] sm:$0xff]
      %v466 = vld [vmem:[%s2 + $0x20] sm:$0xff]
      %v467 = vld [vmem:[%s2 + $0x28] sm:$0xff]
      %v468 = vmul.f32 %v462, 0.03125
      %v469 = vmul.f32 %v463, 0.03125
      %v470 = vmul.f32 %v464, 0.03125
      %v471 = vmul.f32 %v465, 0.03125
      %v472 = vmul.f32 %v466, 0.03125
      %v473 = vmul.f32 %v467, 0.03125
      %v474 = vmul.f32 %v456, %v456
      %v475 = vmul.f32 %v457, %v457
      %v476 = vmul.f32 %v458, %v458
      %v477 = vmul.f32 %v459, %v459
      %v478 = vmul.f32 %v460, %v460
      %v479 = vmul.f32 %v461, %v461
      %v481 = vsel %vm80, %v474, 0
      %v484 = vsel %vm80, %v475, 0
      %v487 = vsel %vm80, %v476, 0
      %v490 = vsel %vm80, %v477, 0
      %v493 = vsel %vm80, %v478, 0
      %v496 = vsel %vm80, %v479, 0
      %498 = vmatprep.subr.mxu0 0.0
      %499 = vmatpush1.xpose.msra.mxu0 %v481
      %500 = vmatprep.subr.mxu0 0.0
      %501 = vmatpush1.xpose.msra.mxu0 %v484
      %502 = vmatprep.subr.mxu0 0.0
      %503 = vmatpush1.xpose.msra.mxu0 %v487
      %504 = vmatprep.subr.mxu0 0.0
      %505 = vmatpush1.xpose.msra.mxu0 %v490
      %506 = vmatprep.subr.mxu0 0.0
      %507 = vmatpush1.xpose.msra.mxu0 %v493
      %508 = vmatprep.subr.mxu0 0.0
      %509 = vmatpush1.xpose.msra.mxu0 %v496
      %510 = vmatprep.subr.mxu0 0.0
      %511 = vmatpush1.xpose.msra.mxu0 0.0
      %512 = vmatprep.subr.mxu0 0.0
      %513 = vmatpush1.xpose.msra.mxu0 0.0
      %514 = vmatprep.subr.mxu0 0.0
      %515 = vmatpush1.xpose.msra.mxu0 0.0
      %516 = vmatprep.subr.mxu0 0.0
      %517 = vmatpush1.xpose.msra.mxu0 0.0
      %518 = vmatprep.subr.mxu0 0.0
      %519 = vmatpush1.xpose.msra.mxu0 0.0
      %520 = vmatprep.subr.mxu0 0.0
      %521 = vmatpush1.xpose.msra.mxu0 0.0
      %522 = vmatprep.subr.mxu0 0.0
      %523 = vmatpush1.xpose.msra.mxu0 0.0
      %524 = vmatprep.subr.mxu0 0.0
      %525 = vmatpush1.xpose.msra.mxu0 0.0
      %526 = vmatprep.subr.mxu0 0.0
      %527 = vmatpush1.xpose.msra.mxu0 0.0
      %528 = vmatprep.subr.mxu0 0.0
      %529 = vmatpush1.xpose.msra.mxu0 0.0
      %530 = vmatprep.subr.mxu0 0.0
      %531 = vmatpush1.xpose.msra.mxu0 0.0
      %532 = vmatprep.subr.mxu0 0.0
      %533 = vmatpush1.xpose.msra.mxu0 0.0
      %534 = vmatprep.subr.mxu0 0.0
      %535 = vmatpush1.xpose.msra.mxu0 0.0
      %536 = vmatprep.subr.mxu0 0.0
      %537 = vmatpush1.xpose.msra.mxu0 0.0
      %538 = vmatprep.subr.mxu0 0.0
      %539 = vmatpush1.xpose.msra.mxu0 0.0
      %540 = vmatprep.subr.mxu0 0.0
      %541 = vmatpush1.xpose.msra.mxu0 0.0
      %542 = vmatprep.subr.mxu0 0.0
      %543 = vmatpush1.xpose.msra.mxu0 0.0
      %544 = vmatprep.subr.mxu0 0.0
      %545 = vmatpush1.xpose.msra.mxu0 0.0
      %546 = vmatprep.subr.mxu0 0.0
      %547 = vmatpush1.xpose.msra.mxu0 0.0
      %548 = vmatprep.subr.mxu0 0.0
      %549 = vmatpush1.xpose.msra.mxu0 0.0
      %550 = vmatprep.subr.mxu0 0.0
      %551 = vmatpush1.xpose.msra.mxu0 0.0
      %552 = vmatprep.subr.mxu0 0.0
      %553 = vmatpush1.xpose.msra.mxu0 0.0
      %554 = vmatprep.subr.mxu0 0.0
      %555 = vmatpush1.xpose.msra.mxu0 0.0
      %556 = vmatprep.subr.mxu0 0.0
      %557 = vmatpush1.xpose.msra.mxu0 0.0
      %558 = vmatprep.subr.mxu0 0.0
      %559 = vmatpush1.xpose.msra.mxu0 0.0
      %560 = vmatprep.subr.mxu0 0.0
      %561 = vmatpush1.xpose.msra.mxu0 0.0
      %562 = vmatprep.mubr.f32.mxu0 0.0
      %563 = vmatmul.mubr.f32.gmra.mrb[0].mxu0 %v106
      %v564 = vpop.f32.mrb[0].mxu0
      %v565 = vadd.f32 0.0, %v564
      %v566 = vpop.f32.mrb[0].mxu0
      %567 = vdwg.mxu0
      %v568 = vmul.f32 %v468, %v468
      %v569 = vmul.f32 %v469, %v469
      %v570 = vmul.f32 %v470, %v470
      %v571 = vmul.f32 %v471, %v471
      %v572 = vmul.f32 %v472, %v472
      %v573 = vmul.f32 %v473, %v473
      %v574 = vsel %vm80, %v568, 0.0
      %575 = vadd.xlane.f32.xlu0 %v574
      %v576 = vpop.xlane.xlu0 %575
      %v577 = vsel %vm80, %v569, 0.0
      %578 = vadd.xlane.f32.xlu0 %v577
      %v579 = vpop.xlane.xlu0 %578
      %v580 = vsel %vm80, %v570, 0.0
      %581 = vadd.xlane.f32.xlu0 %v580
      %v582 = vpop.xlane.xlu0 %581
      %v583 = vsel %vm80, %v571, 0.0
      %584 = vadd.xlane.f32.xlu0 %v583
      %v585 = vpop.xlane.xlu0 %584
      %v586 = vsel %vm80, %v572, 0.0
      %587 = vadd.xlane.f32.xlu0 %v586
      %v588 = vpop.xlane.xlu0 %587
      %v589 = vsel %vm80, %v573, 0.0
      %590 = vadd.xlane.f32.xlu0 %v589
      %v591 = vpop.xlane.xlu0 %590
      %v593 = vsel %vm80, %v456, 0
      %v596 = vsel %vm80, %v457, 0
      %v599 = vsel %vm80, %v458, 0
      %v602 = vsel %vm80, %v459, 0
      %v605 = vsel %vm80, %v460, 0
      %v608 = vsel %vm80, %v461, 0
      %610 = vmatprep.subr.mxu0 0.0
      %611 = vmatpush1.xpose.msra.mxu0 %v593
      %612 = vmatprep.subr.mxu0 0.0
      %613 = vmatpush1.xpose.msra.mxu0 %v596
      %614 = vmatprep.subr.mxu0 0.0
      %615 = vmatpush1.xpose.msra.mxu0 %v599
      %616 = vmatprep.subr.mxu0 0.0
      %617 = vmatpush1.xpose.msra.mxu0 %v602
      %618 = vmatprep.subr.mxu0 0.0
      %619 = vmatpush1.xpose.msra.mxu0 %v605
      %620 = vmatprep.subr.mxu0 0.0
      %621 = vmatpush1.xpose.msra.mxu0 %v608
      %622 = vmatprep.subr.mxu0 0.0
      %623 = vmatpush1.xpose.msra.mxu0 0.0
      %624 = vmatprep.subr.mxu0 0.0
      %625 = vmatpush1.xpose.msra.mxu0 0.0
      %626 = vmatprep.subr.mxu0 0.0
      %627 = vmatpush1.xpose.msra.mxu0 0.0
      %628 = vmatprep.subr.mxu0 0.0
      %629 = vmatpush1.xpose.msra.mxu0 0.0
      %630 = vmatprep.subr.mxu0 0.0
      %631 = vmatpush1.xpose.msra.mxu0 0.0
      %632 = vmatprep.subr.mxu0 0.0
      %633 = vmatpush1.xpose.msra.mxu0 0.0
      %634 = vmatprep.subr.mxu0 0.0
      %635 = vmatpush1.xpose.msra.mxu0 0.0
      %636 = vmatprep.subr.mxu0 0.0
      %637 = vmatpush1.xpose.msra.mxu0 0.0
      %638 = vmatprep.subr.mxu0 0.0
      %639 = vmatpush1.xpose.msra.mxu0 0.0
      %640 = vmatprep.subr.mxu0 0.0
      %641 = vmatpush1.xpose.msra.mxu0 0.0
      %642 = vmatprep.subr.mxu0 0.0
      %643 = vmatpush1.xpose.msra.mxu0 0.0
      %644 = vmatprep.subr.mxu0 0.0
      %645 = vmatpush1.xpose.msra.mxu0 0.0
      %646 = vmatprep.subr.mxu0 0.0
      %647 = vmatpush1.xpose.msra.mxu0 0.0
      %648 = vmatprep.subr.mxu0 0.0
      %649 = vmatpush1.xpose.msra.mxu0 0.0
      %650 = vmatprep.subr.mxu0 0.0
      %651 = vmatpush1.xpose.msra.mxu0 0.0
      %652 = vmatprep.subr.mxu0 0.0
      %653 = vmatpush1.xpose.msra.mxu0 0.0
      %654 = vmatprep.subr.mxu0 0.0
      %655 = vmatpush1.xpose.msra.mxu0 0.0
      %656 = vmatprep.subr.mxu0 0.0
      %657 = vmatpush1.xpose.msra.mxu0 0.0
      %658 = vmatprep.subr.mxu0 0.0
      %659 = vmatpush1.xpose.msra.mxu0 0.0
      %660 = vmatprep.subr.mxu0 0.0
      %661 = vmatpush1.xpose.msra.mxu0 0.0
      %662 = vmatprep.subr.mxu0 0.0
      %663 = vmatpush1.xpose.msra.mxu0 0.0
      %664 = vmatprep.subr.mxu0 0.0
      %665 = vmatpush1.xpose.msra.mxu0 0.0
      %666 = vmatprep.subr.mxu0 0.0
      %667 = vmatpush1.xpose.msra.mxu0 0.0
      %668 = vmatprep.subr.mxu0 0.0
      %669 = vmatpush1.xpose.msra.mxu0 0.0
      %670 = vmatprep.subr.mxu0 0.0
      %671 = vmatpush1.xpose.msra.mxu0 0.0
      %672 = vmatprep.subr.mxu0 0.0
      %673 = vmatpush1.xpose.msra.mxu0 0.0
      %674 = vmatprep.mubr.f32.mxu0 0.0
      %675 = vmatmul.mubr.f32.gmra.mrb[0].mxu0 %v197
      %v676 = vpop.f32.mrb[0].mxu0
      %v677 = vadd.f32 0.0, %v676
      %v678 = vpop.f32.mrb[0].mxu0
      %679 = vmatprep.mubr.f32.mxu0 0.0
      %680 = vmatmul.mubr.f32.gmra.mrb[0].mxu0 %v200
      %v681 = vpop.f32.mrb[0].mxu0
      %v682 = vadd.f32 0.0, %v681
      %v683 = vpop.f32.mrb[0].mxu0
      %684 = vmatprep.mubr.f32.mxu0 0.0
      %685 = vmatmul.mubr.f32.gmra.mrb[0].mxu0 %v203
      %v686 = vpop.f32.mrb[0].mxu0
      %v687 = vadd.f32 0.0, %v686
      %v688 = vpop.f32.mrb[0].mxu0
      %689 = vmatprep.mubr.f32.mxu0 0.0
      %690 = vmatmul.mubr.f32.gmra.mrb[0].mxu0 %v206
      %v691 = vpop.f32.mrb[0].mxu0
      %v692 = vadd.f32 0.0, %v691
      %v693 = vpop.f32.mrb[0].mxu0
      %694 = vmatprep.mubr.f32.mxu0 0.0
      %695 = vmatmul.mubr.f32.gmra.mrb[0].mxu0 %v209
      %v696 = vpop.f32.mrb[0].mxu0
      %v697 = vadd.f32 0.0, %v696
      %v698 = vpop.f32.mrb[0].mxu0
      %699 = vmatprep.mubr.f32.mxu0 0.0
      %700 = vmatmul.mubr.f32.gmra.mrb[0].mxu0 %v212
      %v701 = vpop.f32.mrb[0].mxu0
      %v702 = vadd.f32 0.0, %v701
      %v703 = vpop.f32.mrb[0].mxu0
      %704 = vdwg.mxu0
      %v706 = vsel %vm80, %v468, 0
      %v709 = vsel %vm80, %v469, 0
      %v712 = vsel %vm80, %v470, 0
      %v715 = vsel %vm80, %v471, 0
      %v718 = vsel %vm80, %v472, 0
      %v721 = vsel %vm80, %v473, 0
      %723 = vmatprep.subr.mxu0 0.0
      %724 = vmatpush1.xpose.msra.mxu0 %v215
      %725 = vmatprep.subr.mxu0 0.0
      %726 = vmatpush1.xpose.msra.mxu0 %v218
      %727 = vmatprep.subr.mxu0 0.0
      %728 = vmatpush1.xpose.msra.mxu0 %v221
      %729 = vmatprep.subr.mxu0 0.0
      %730 = vmatpush1.xpose.msra.mxu0 %v224
      %731 = vmatprep.subr.mxu0 0.0
      %732 = vmatpush1.xpose.msra.mxu0 %v227
      %733 = vmatprep.subr.mxu0 0.0
      %734 = vmatpush1.xpose.msra.mxu0 %v230
      %735 = vmatprep.subr.mxu0 0.0
      %736 = vmatpush1.xpose.msra.mxu0 0.0
      %737 = vmatprep.subr.mxu0 0.0
      %738 = vmatpush1.xpose.msra.mxu0 0.0
      %739 = vmatprep.subr.mxu0 0.0
      %740 = vmatpush1.xpose.msra.mxu0 0.0
      %741 = vmatprep.subr.mxu0 0.0
      %742 = vmatpush1.xpose.msra.mxu0 0.0
      %743 = vmatprep.subr.mxu0 0.0
      %744 = vmatpush1.xpose.msra.mxu0 0.0
      %745 = vmatprep.subr.mxu0 0.0
      %746 = vmatpush1.xpose.msra.mxu0 0.0
      %747 = vmatprep.subr.mxu0 0.0
      %748 = vmatpush1.xpose.msra.mxu0 0.0
      %749 = vmatprep.subr.mxu0 0.0
      %750 = vmatpush1.xpose.msra.mxu0 0.0
      %751 = vmatprep.subr.mxu0 0.0
      %752 = vmatpush1.xpose.msra.mxu0 0.0
      %753 = vmatprep.subr.mxu0 0.0
      %754 = vmatpush1.xpose.msra.mxu0 0.0
      %755 = vmatprep.subr.mxu0 0.0
      %756 = vmatpush1.xpose.msra.mxu0 0.0
      %757 = vmatprep.subr.mxu0 0.0
      %758 = vmatpush1.xpose.msra.mxu0 0.0
      %759 = vmatprep.subr.mxu0 0.0
      %760 = vmatpush1.xpose.msra.mxu0 0.0
      %761 = vmatprep.subr.mxu0 0.0
      %762 = vmatpush1.xpose.msra.mxu0 0.0
      %763 = vmatprep.subr.mxu0 0.0
      %764 = vmatpush1.xpose.msra.mxu0 0.0
      %765 = vmatprep.subr.mxu0 0.0
      %766 = vmatpush1.xpose.msra.mxu0 0.0
      %767 = vmatprep.subr.mxu0 0.0
      %768 = vmatpush1.xpose.msra.mxu0 0.0
      %769 = vmatprep.subr.mxu0 0.0
      %770 = vmatpush1.xpose.msra.mxu0 0.0
      %771 = vmatprep.subr.mxu0 0.0
      %772 = vmatpush1.xpose.msra.mxu0 0.0
      %773 = vmatprep.subr.mxu0 0.0
      %774 = vmatpush1.xpose.msra.mxu0 0.0
      %775 = vmatprep.subr.mxu0 0.0
      %776 = vmatpush1.xpose.msra.mxu0 0.0
      %777 = vmatprep.subr.mxu0 0.0
      %778 = vmatpush1.xpose.msra.mxu0 0.0
      %779 = vmatprep.subr.mxu0 0.0
      %780 = vmatpush1.xpose.msra.mxu0 0.0
      %781 = vmatprep.subr.mxu0 0.0
      %782 = vmatpush1.xpose.msra.mxu0 0.0
      %783 = vmatprep.subr.mxu0 0.0
      %784 = vmatpush1.xpose.msra.mxu0 0.0
      %785 = vmatprep.subr.mxu0 0.0
      %786 = vmatpush1.xpose.msra.mxu0 0.0
      %787 = vmatprep.mubr.f32.mxu0 0.0
      %788 = vmatmul.mubr.f32.gmra.mrb[0].mxu0 %v706
      %v789 = vpop.f32.mrb[0].mxu0
      %v790 = vadd.f32 0.0, %v789
      %v791 = vpop.f32.mrb[0].mxu0
      %792 = vmatprep.mubr.f32.mxu0 0.0
      %793 = vmatmul.mubr.f32.gmra.mrb[0].mxu0 %v709
      %v794 = vpop.f32.mrb[0].mxu0
      %v795 = vadd.f32 0.0, %v794
      %v796 = vpop.f32.mrb[0].mxu0
      %797 = vmatprep.mubr.f32.mxu0 0.0
      %798 = vmatmul.mubr.f32.gmra.mrb[0].mxu0 %v712
      %v799 = vpop.f32.mrb[0].mxu0
      %v800 = vadd.f32 0.0, %v799
      %v801 = vpop.f32.mrb[0].mxu0
      %802 = vmatprep.mubr.f32.mxu0 0.0
      %803 = vmatmul.mubr.f32.gmra.mrb[0].mxu0 %v715
      %v804 = vpop.f32.mrb[0].mxu0
      %v805 = vadd.f32 0.0, %v804
      %v806 = vpop.f32.mrb[0].mxu0
      %807 = vmatprep.mubr.f32.mxu0 0.0
      %808 = vmatmul.mubr.f32.gmra.mrb[0].mxu0 %v718
      %v809 = vpop.f32.mrb[0].mxu0
      %v810 = vadd.f32 0.0, %v809
      %v811 = vpop.f32.mrb[0].mxu0
      %812 = vmatprep.mubr.f32.mxu0 0.0
      %813 = vmatmul.mubr.f32.gmra.mrb[0].mxu0 %v721
      %v814 = vpop.f32.mrb[0].mxu0
      %v815 = vadd.f32 0.0, %v814
      %v816 = vpop.f32.mrb[0].mxu0
      %817 = vdwg.mxu0
      %p818 = scmp.eq.s32.totalorder 0, 0
      %s819 = scalar_select %p818, 1.0, 2.0
      %v820 = vld [vmem:[#allocation2] sm:$0x1]
      %v821 = vmul.f32 %v677, 2.0
      %v822 = vmul.f32 %v682, 2.0
      %v823 = vmul.f32 %v687, 2.0
      %v824 = vmul.f32 %v692, 2.0
      %v825 = vmul.f32 %v697, 2.0
      %v826 = vmul.f32 %v702, 2.0
      %v827 = vsub.f32 %v821, %v83
      %v828 = vsub.f32 %v822, %v86
      %v829 = vsub.f32 %v823, %v89
      %v830 = vsub.f32 %v824, %v92
      %v831 = vsub.f32 %v825, %v95
      %v832 = vsub.f32 %v826, %v98
      %v833 = vlaneseq
      %v834 = vshrl.u32 %v833, 7
      %v835 = vsub.s32 0, %v834
      %v836 = vrot.slane %v565, %v835
      %v837 = vsub.f32 %v827, %v836
      %v838 = vsub.f32 %v828, %v836
      %v839 = vsub.f32 %v829, %v836
      %v840 = vsub.f32 %v830, %v836
      %v841 = vsub.f32 %v831, %v836
      %v842 = vsub.f32 %v832, %v836
      %v843 = vmin.f32 %v837, 0.0
      %v844 = vmin.f32 %v838, 0.0
      %v845 = vmin.f32 %v839, 0.0
      %v846 = vmin.f32 %v840, 0.0
      %v847 = vmin.f32 %v841, 0.0
      %v848 = vmin.f32 %v842, 0.0
      %v849 = vmul.f32 %v843, 1.442695
      %v850 = vpow.pop %v849
      %v851 = vmul.f32 %v844, 1.442695
      %v852 = vpow.pop %v851
      %v853 = vmul.f32 %v845, 1.442695
      %v854 = vpow.pop %v853
      %v855 = vmul.f32 %v846, 1.442695
      %v856 = vpow.pop %v855
      %v857 = vmul.f32 %v847, 1.442695
      %v858 = vpow.pop %v857
      %v859 = vmul.f32 %v848, 1.442695
      %v860 = vpow.pop %v859
      %861 = vmatprep.subr.mxu0 0.0
      %862 = vmatpush1.msra.mxu0 %v850
      %863 = vmatprep.subr.mxu0 0.0
      %864 = vmatpush1.msra.mxu0 %v852
      %865 = vmatprep.subr.mxu0 0.0
      %866 = vmatpush1.msra.mxu0 %v854
      %867 = vmatprep.subr.mxu0 0.0
      %868 = vmatpush1.msra.mxu0 %v856
      %869 = vmatprep.subr.mxu0 0.0
      %870 = vmatpush1.msra.mxu0 %v858
      %871 = vmatprep.subr.mxu0 0.0
      %872 = vmatpush1.msra.mxu0 %v860
      %873 = vmatprep.subr.mxu0 0.0
      %874 = vmatpush1.msra.mxu0 0.0
      %875 = vmatprep.subr.mxu0 0.0
      %876 = vmatpush1.msra.mxu0 0.0
      %877 = vmatprep.subr.mxu0 0.0
      %878 = vmatpush1.msra.mxu0 0.0
      %879 = vmatprep.subr.mxu0 0.0
      %880 = vmatpush1.msra.mxu0 0.0
      %881 = vmatprep.subr.mxu0 0.0
      %882 = vmatpush1.msra.mxu0 0.0
      %883 = vmatprep.subr.mxu0 0.0
      %884 = vmatpush1.msra.mxu0 0.0
      %885 = vmatprep.subr.mxu0 0.0
      %886 = vmatpush1.msra.mxu0 0.0
      %887 = vmatprep.subr.mxu0 0.0
      %888 = vmatpush1.msra.mxu0 0.0
      %889 = vmatprep.subr.mxu0 0.0
      %890 = vmatpush1.msra.mxu0 0.0
      %891 = vmatprep.subr.mxu0 0.0
      %892 = vmatpush1.msra.mxu0 0.0
      %893 = vmatprep.subr.mxu0 0.0
      %894 = vmatpush1.msra.mxu0 0.0
      %895 = vmatprep.subr.mxu0 0.0
      %896 = vmatpush1.msra.mxu0 0.0
      %897 = vmatprep.subr.mxu0 0.0
      %898 = vmatpush1.msra.mxu0 0.0
      %899 = vmatprep.subr.mxu0 0.0
      %900 = vmatpush1.msra.mxu0 0.0
      %901 = vmatprep.subr.mxu0 0.0
      %902 = vmatpush1.msra.mxu0 0.0
      %903 = vmatprep.subr.mxu0 0.0
      %904 = vmatpush1.msra.mxu0 0.0
      %905 = vmatprep.subr.mxu0 0.0
      %906 = vmatpush1.msra.mxu0 0.0
      %907 = vmatprep.subr.mxu0 0.0
      %908 = vmatpush1.msra.mxu0 0.0
      %909 = vmatprep.subr.mxu0 0.0
      %910 = vmatpush1.msra.mxu0 0.0
      %911 = vmatprep.subr.mxu0 0.0
      %912 = vmatpush1.msra.mxu0 0.0
      %913 = vmatprep.subr.mxu0 0.0
      %914 = vmatpush1.msra.mxu0 0.0
      %915 = vmatprep.subr.mxu0 0.0
      %916 = vmatpush1.msra.mxu0 0.0
      %917 = vmatprep.subr.mxu0 0.0
      %918 = vmatpush1.msra.mxu0 0.0
      %919 = vmatprep.subr.mxu0 0.0
      %920 = vmatpush1.msra.mxu0 0.0
      %921 = vmatprep.subr.mxu0 0.0
      %922 = vmatpush1.msra.mxu0 0.0
      %923 = vmatprep.subr.mxu0 0.0
      %924 = vmatpush1.msra.mxu0 0.0
      %925 = vmatprep.mubr.f32.mxu0 0.0
      %926 = vmatmul.mubr.f32.gmra.mrb[0].mxu0 %v370
      %v927 = vpop.f32.mrb[0].mxu0
      %v928 = vadd.f32 0.0, %v927
      %v929 = vpop.f32.mrb[0].mxu0
      %930 = vdwg.mxu0
      %v931 = vmul.f32 %v928, %v67
      %v932 = vstv %s819
      %v933 = vmul.f32 %v932, %v931
      %v934 = vadd.f32 %v820, %v933
      %935 = vst.msk [vmem:[#allocation2] sm:$0x1] %vm444, %v934
      %v936 = vld [vmem:[#allocation4] sm:$0x1]
      %v937 = vmul.f32 %v790, 2.0
      %v938 = vmul.f32 %v795, 2.0
      %v939 = vmul.f32 %v800, 2.0
      %v940 = vmul.f32 %v805, 2.0
      %v941 = vmul.f32 %v810, 2.0
      %v942 = vmul.f32 %v815, 2.0
      %v943 = vsub.f32 %v937, %v576
      %v944 = vsub.f32 %v938, %v579
      %v945 = vsub.f32 %v939, %v582
      %v946 = vsub.f32 %v940, %v585
      %v947 = vsub.f32 %v941, %v588
      %v948 = vsub.f32 %v942, %v591
      %v949 = vsub.f32 %v943, %v343
      %v950 = vsub.f32 %v944, %v343
      %v951 = vsub.f32 %v945, %v343
      %v952 = vsub.f32 %v946, %v343
      %v953 = vsub.f32 %v947, %v343
      %v954 = vsub.f32 %v948, %v343
      %v955 = vmin.f32 %v949, 0.0
      %v956 = vmin.f32 %v950, 0.0
      %v957 = vmin.f32 %v951, 0.0
      %v958 = vmin.f32 %v952, 0.0
      %v959 = vmin.f32 %v953, 0.0
      %v960 = vmin.f32 %v954, 0.0
      %v961 = vmul.f32 %v955, 1.442695
      %v962 = vpow.pop %v961
      %v963 = vmul.f32 %v956, 1.442695
      %v964 = vpow.pop %v963
      %v965 = vmul.f32 %v957, 1.442695
      %v966 = vpow.pop %v965
      %v967 = vmul.f32 %v958, 1.442695
      %v968 = vpow.pop %v967
      %v969 = vmul.f32 %v959, 1.442695
      %v970 = vpow.pop %v969
      %v971 = vmul.f32 %v960, 1.442695
      %v972 = vpow.pop %v971
      %v974 = vsel %vm368, %v70, 0
      %976 = vmatprep.subr.mxu0 0.0
      %977 = vmatpush1.msra.mxu0 %v962
      %978 = vmatprep.subr.mxu0 0.0
      %979 = vmatpush1.msra.mxu0 %v964
      %980 = vmatprep.subr.mxu0 0.0
      %981 = vmatpush1.msra.mxu0 %v966
      %982 = vmatprep.subr.mxu0 0.0
      %983 = vmatpush1.msra.mxu0 %v968
      %984 = vmatprep.subr.mxu0 0.0
      %985 = vmatpush1.msra.mxu0 %v970
      %986 = vmatprep.subr.mxu0 0.0
      %987 = vmatpush1.msra.mxu0 %v972
      %988 = vmatprep.subr.mxu0 0.0
      %989 = vmatpush1.msra.mxu0 0.0
      %990 = vmatprep.subr.mxu0 0.0
      %991 = vmatpush1.msra.mxu0 0.0
      %992 = vmatprep.subr.mxu0 0.0
      %993 = vmatpush1.msra.mxu0 0.0
      %994 = vmatprep.subr.mxu0 0.0
      %995 = vmatpush1.msra.mxu0 0.0
      %996 = vmatprep.subr.mxu0 0.0
      %997 = vmatpush1.msra.mxu0 0.0
      %998 = vmatprep.subr.mxu0 0.0
      %999 = vmatpush1.msra.mxu0 0.0
      %1000 = vmatprep.subr.mxu0 0.0
      %1001 = vmatpush1.msra.mxu0 0.0
      %1002 = vmatprep.subr.mxu0 0.0
      %1003 = vmatpush1.msra.mxu0 0.0
      %1004 = vmatprep.subr.mxu0 0.0
      %1005 = vmatpush1.msra.mxu0 0.0
      %1006 = vmatprep.subr.mxu0 0.0
      %1007 = vmatpush1.msra.mxu0 0.0
      %1008 = vmatprep.subr.mxu0 0.0
      %1009 = vmatpush1.msra.mxu0 0.0
      %1010 = vmatprep.subr.mxu0 0.0
      %1011 = vmatpush1.msra.mxu0 0.0
      %1012 = vmatprep.subr.mxu0 0.0
      %1013 = vmatpush1.msra.mxu0 0.0
      %1014 = vmatprep.subr.mxu0 0.0
      %1015 = vmatpush1.msra.mxu0 0.0
      %1016 = vmatprep.subr.mxu0 0.0
      %1017 = vmatpush1.msra.mxu0 0.0
      %1018 = vmatprep.subr.mxu0 0.0
      %1019 = vmatpush1.msra.mxu0 0.0
      %1020 = vmatprep.subr.mxu0 0.0
      %1021 = vmatpush1.msra.mxu0 0.0
      %1022 = vmatprep.subr.mxu0 0.0
      %1023 = vmatpush1.msra.mxu0 0.0
      %1024 = vmatprep.subr.mxu0 0.0
      %1025 = vmatpush1.msra.mxu0 0.0
      %1026 = vmatprep.subr.mxu0 0.0
      %1027 = vmatpush1.msra.mxu0 0.0
      %1028 = vmatprep.subr.mxu0 0.0
      %1029 = vmatpush1.msra.mxu0 0.0
      %1030 = vmatprep.subr.mxu0 0.0
      %1031 = vmatpush1.msra.mxu0 0.0
      %1032 = vmatprep.subr.mxu0 0.0
      %1033 = vmatpush1.msra.mxu0 0.0
      %1034 = vmatprep.subr.mxu0 0.0
      %1035 = vmatpush1.msra.mxu0 0.0
      %1036 = vmatprep.subr.mxu0 0.0
      %1037 = vmatpush1.msra.mxu0 0.0
      %1038 = vmatprep.subr.mxu0 0.0
      %1039 = vmatpush1.msra.mxu0 0.0
      %1040 = vmatprep.mubr.f32.mxu0 0.0
      %1041 = vmatmul.mubr.f32.gmra.mrb[0].mxu0 %v974
      %v1042 = vpop.f32.mrb[0].mxu0
      %v1043 = vadd.f32 0.0, %v1042
      %v1044 = vpop.f32.mrb[0].mxu0
      %1045 = vdwg.mxu0
      %v1046 = vmul.f32 %v1043, %v73
      %v1047 = vmul.f32 %v932, %v1046
      %v1048 = vadd.f32 %v936, %v1047
      %1049 = vst.msk [vmem:[#allocation4] sm:$0x1] %vm444, %v1048
    $region25: #{tpu_custom_call.1} parent=1 // pred_fallthru
      _
    // Predicated region
    $region26: #{tpu_custom_call.1} parent=1 // pred_check
      _
    $region27: #{tpu_custom_call.1} parent=1 // pred_check_branch
      %1051 = sbr.rel (0) target = $region29
    $region28: #{tpu_custom_call.1} parent=1 // pred_region
      %s1053 = ssub.s32 16, 16
      %1054 = vsyncadd [#allocation3], %s1053
      %s1056 = sshll.u32 [#allocation2], 4
      %s1057 = int_to_ptr.vmem [resolvable:$true] %s1056
      %1059 = dma.vmem_to_hbm [thread:$0]  %s1057, 16, %s4, [#allocation3]
    $region29: #{tpu_custom_call.1} parent=1 // pred_fallthru
      _
    // Predicated region
    $region30: #{tpu_custom_call.1} parent=1 // pred_check
      _
    $region31: #{tpu_custom_call.1} parent=1 // pred_check_branch
      %1061 = sbr.rel (0) target = $region33
    $region32: #{tpu_custom_call.1} parent=1 // pred_region
      %s1063 = ssub.s32 16, 16
      %1064 = vsyncadd [#allocation5], %s1063
      %s1066 = sshll.u32 [#allocation4], 4
      %s1067 = int_to_ptr.vmem [resolvable:$true] %s1066
      %1069 = dma.vmem_to_hbm [thread:$0]  %s1067, 16, %s5, [#allocation5]
    $region33: #{tpu_custom_call.1} parent=1 // pred_fallthru
      _
    // Predicated region
    $region34: #{tpu_custom_call.1} parent=1 // pred_check
      _
    $region35: #{tpu_custom_call.1} parent=1 // pred_check_branch
      %1071 = sbr.rel (0) target = $region37
    $region36: #{tpu_custom_call.1} parent=1 // pred_region
      %s1073 = ssub.s32 16, 16
      %1074 = vsyncadd [#allocation5], %s1073
      %s1076 = sshll.u32 [#allocation6], 4
      %s1077 = int_to_ptr.vmem [resolvable:$true] %s1076
      %1079 = dma.vmem_to_hbm [thread:$0]  %s1077, 16, %s6, [#allocation5]
    $region37: #{tpu_custom_call.1} parent=1 // pred_fallthru
      _
    // Predicated region
    $region38: #{tpu_custom_call.1} parent=1 // pred_check
      _
    $region39: #{tpu_custom_call.1} parent=1 // pred_check_branch
      %1081 = sbr.rel (0) target = $region41
    $region40: #{tpu_custom_call.1} parent=1 // pred_region
      %1082 = dma.done [#allocation3], 16
    $region41: #{tpu_custom_call.1} parent=1 // pred_fallthru
      _
    // Predicated region
    $region42: #{tpu_custom_call.1} parent=1 // pred_check
      _
    $region43: #{tpu_custom_call.1} parent=1 // pred_check_branch
      %1084 = sbr.rel (0) target = $region45
    $region44: #{tpu_custom_call.1} parent=1 // pred_region
      %1085 = dma.done [#allocation5], 16
    $region45: #{tpu_custom_call.1} parent=1 // pred_fallthru
      _
    // Predicated region
    $region46: #{tpu_custom_call.1} parent=1 // pred_check
      _
    $region47: #{tpu_custom_call.1} parent=1 // pred_check_branch
      %1087 = sbr.rel (0) target = $region49
    $region48: #{tpu_custom_call.1} parent=1 // pred_region
      %1088 = dma.done [#allocation5], 16
    $region49: #{tpu_custom_call.1} parent=1 // pred_fallthru
      _
    %1089 = vsyncpa [#allocation3], 1
    %1090 = vsyncpa [#allocation5], 1

</llo_original>
